<compile_context>
chip_gen: v7x
topology: tpu7x:2x2x1
jax: 0.10.0
libtpu: 0.0.40
codegen_flags: <defaults>
</compile_context>

<pallas_src>
import functools

import jax
import jax.numpy as jnp
from jax.experimental import pallas as pl
from jax.experimental.pallas import tpu as pltpu


def cbow_single_tile_kernel(mean_ref, wt_ref, b_ref, out_ref):
    """Whole padded vocab in one tile: plain GEMV + one-shot log-softmax.

    mean_ref : (1, D)      bf16  context mean
    wt_ref   : (D, V_pad)  bf16  pre-transposed weight
    b_ref    : (1, V_pad)  f32   bias (pad cols = -1e30)
    out_ref  : (1, V_pad)  f32   log-probs
    """
    logits = jnp.dot(mean_ref[...], wt_ref[...],
                     preferred_element_type=jnp.float32)
    logits = logits + b_ref[...]
    m = jnp.max(logits, axis=-1, keepdims=True)
    lse = m + jnp.log(jnp.sum(jnp.exp(logits - m), axis=-1, keepdims=True))
    out_ref[...] = logits - lse


def cbow_streamed_kernel(mean_ref, wt_ref, b_ref, out_ref, m_ref, l_ref):
    """One vocab tile per grid step, online (flash-style) log-softmax.

    mean_ref : (1, D)       bf16  context mean (resident)
    wt_ref   : (D, TILE_V)  bf16  pre-transposed weight tile (streamed)
    b_ref    : (1, V_pad)   f32   full bias (resident)
    out_ref  : (1, V_pad)   f32   full logits / log-prob block (resident)
    m_ref    : (1, 1)       f32   running max
    l_ref    : (1, 1)       f32   running sum-exp
    """
    j = pl.program_id(0)
    tile_v = wt_ref.shape[1]

    @pl.when(j == 0)
    def _init():
        m_ref[...] = jnp.full_like(m_ref, -jnp.inf)
        l_ref[...] = jnp.zeros_like(l_ref)

    start = pl.multiple_of(j * tile_v, tile_v)                    # 128-aligned

    # (1, D) @ (D, TILE_V) on the MXU, bf16 inputs, f32 accumulation.
    logits = jnp.dot(mean_ref[...], wt_ref[...],
                     preferred_element_type=jnp.float32)
    logits = logits + b_ref[:, pl.ds(start, tile_v)]              # (1, TILE_V)

    # Online log-softmax statistics.
    m_old = m_ref[...]                                            # (1, 1)
    m_new = jnp.maximum(m_old, jnp.max(logits, axis=-1, keepdims=True))
    l_ref[...] = (l_ref[...] * jnp.exp(m_old - m_new)
                  + jnp.sum(jnp.exp(logits - m_new), axis=-1, keepdims=True))
    m_ref[...] = m_new

    # Stash raw logits for this tile into the resident output block.
    out_ref[:, pl.ds(start, tile_v)] = logits

    @pl.when(j == pl.num_programs(0) - 1)
    def _finalize():
        # log_softmax = logits - (max + log(sum_exp))
        out_ref[...] = out_ref[...] - (m_ref[...] + jnp.log(l_ref[...]))


def choose_tile_v(vocab_size, embedding_dim,
                  weight_budget_bytes=8 * 1024 * 1024):
    """Pick a 128-aligned vocab tile from the double-buffered bf16 weight
    budget. If the whole padded vocab fits, use a single tile (no carry)."""
    v_pad_full = int(pl.cdiv(vocab_size, 128)) * 128
    per_col_bytes = 2 * 2 * embedding_dim            # 2 buffers x bf16 column
    max_tile = max(128, (weight_budget_bytes // per_col_bytes) // 128 * 128)
    max_tile = int(min(max_tile, 32768))
    if v_pad_full <= max_tile:
        return v_pad_full                            # single-tile fast path
    return max_tile


def cbow_prepare_params(weight, bias, tile_v):
    """ONE-TIME layout prep (kept out of the jitted per-call path):
    (V, D) f32 weight -> (D, V_pad) bf16; bias -> (1, V_pad) f32 with -1e30
    in the padded columns so they never win the max / add to the sum-exp."""
    vocab_size, _ = weight.shape
    v_pad = int(pl.cdiv(vocab_size, tile_v)) * tile_v
    wt = jnp.pad(weight.T.astype(jnp.bfloat16),
                 ((0, 0), (0, v_pad - vocab_size)))
    b2 = jnp.pad(bias.astype(jnp.float32).reshape(1, vocab_size),
                 ((0, 0), (0, v_pad - vocab_size)), constant_values=-1e30)
    return wt, b2


@functools.partial(jax.jit, static_argnames=("vocab_size", "tile_v"))
def cbow_forward(inputs, embedding_table, wt, b2, *, vocab_size, tile_v):
    """inputs: (ctx,) int32. wt/b2 from cbow_prepare_params.
    Returns (1, vocab_size) float32 log-probs."""
    ctx = inputs.shape[0]
    embedding_dim = embedding_table.shape[1]
    d, v_pad = wt.shape
    assert d == embedding_dim
    assert tile_v % 128 == 0 and v_pad % tile_v == 0
    n_tiles = v_pad // tile_v

    # Embedding gather + context mean stay as tiny JAX glue (ctx rows).
    embeds = jnp.take(embedding_table, inputs, axis=0).astype(jnp.float32)
    mean = (jnp.sum(embeds, axis=0, keepdims=True)
            * (1.0 / ctx)).astype(jnp.bfloat16)                  # (1, D)

    in_specs = [
        pl.BlockSpec((1, embedding_dim), lambda j: (0, 0)),        # mean, resident
        pl.BlockSpec((embedding_dim, tile_v), lambda j: (0, j)),   # weight, streamed
        pl.BlockSpec((1, v_pad), lambda j: (0, 0)),                # bias, resident
    ]
    out_spec = pl.BlockSpec((1, v_pad), lambda j: (0, 0))          # resident

    if n_tiles == 1:
        kernel = cbow_single_tile_kernel
        scratch = []
    else:
        kernel = cbow_streamed_kernel
        scratch = [pltpu.VMEM((1, 1), jnp.float32),   # running max
                   pltpu.VMEM((1, 1), jnp.float32)]   # running sum-exp

    # VMEM footprint: double-buffered bf16 weight tiles + resident f32 bias
    # and output blocks + small scalar/mean scratch; 1.5x headroom, capped
    # under v7x's 64 MiB physical VMEM.
    footprint = (2 * tile_v * embedding_dim * 2
                 + 2 * v_pad * 4
                 + 2 * v_pad * 4
                 + 64 * 1024)
    vmem_limit = int(min(60 * 1024 * 1024,
                         max(4 * 1024 * 1024, int(footprint * 1.5))))

    out = pl.pallas_call(
        kernel,
        out_shape=jax.ShapeDtypeStruct((1, v_pad), jnp.float32),
        grid_spec=pltpu.PrefetchScalarGridSpec(
            num_scalar_prefetch=0,
            grid=(n_tiles,),
            in_specs=in_specs,
            out_specs=out_spec,
            scratch_shapes=scratch,
        ),
        compiler_params=pltpu.CompilerParams(
            dimension_semantics=("arbitrary",),   # online-softmax carry
            vmem_limit_bytes=vmem_limit,
        ),
    )(mean, wt, b2)
    return out[:, :vocab_size]


if __name__ == "__main__":
    # Small CBOW-consistent shapes; vocab deliberately not a multiple of 128
    # so the padded-tail path is exercised.
    vocab_size = 1000
    embedding_dim = 64
    context_size = 3
    ctx_len = 2 * context_size

    key = jax.random.PRNGKey(0)
    k_emb, k_w, k_b, k_in = jax.random.split(key, 4)

    # nn.Embedding -> N(0, 1); nn.Linear -> U(-1/sqrt(D), 1/sqrt(D)).
    embedding_table = jax.random.normal(
        k_emb, (vocab_size, embedding_dim), dtype=jnp.float32)
    bound = 1.0 / float(embedding_dim) ** 0.5
    weight = jax.random.uniform(
        k_w, (vocab_size, embedding_dim), dtype=jnp.float32,
        minval=-bound, maxval=bound)
    bias = jax.random.uniform(
        k_b, (vocab_size,), dtype=jnp.float32, minval=-bound, maxval=bound)
    inputs = jax.random.randint(
        k_in, (ctx_len,), 0, vocab_size, dtype=jnp.int32)

    # Reference in plain f32 JAX (same math as the torch module).
    embeds_ref = jnp.take(embedding_table, inputs, axis=0)
    mean_ref = jnp.mean(embeds_ref, axis=0, keepdims=True)
    logits_ref = mean_ref @ weight.T + bias
    ref = jax.nn.log_softmax(logits_ref, axis=-1)

    # --- Path 1: auto tile (single-tile fast path for these shapes) --------
    tile_auto = choose_tile_v(vocab_size, embedding_dim)
    wt_a, b2_a = cbow_prepare_params(weight, bias, tile_auto)   # one-time prep
    log_probs_a = cbow_forward(inputs, embedding_table, wt_a, b2_a,
                               vocab_size=vocab_size, tile_v=tile_auto)
    log_probs_a = jax.block_until_ready(log_probs_a)

    # --- Path 2: forced small tile to exercise the streamed online-softmax -
    tile_small = 256
    wt_s, b2_s = cbow_prepare_params(weight, bias, tile_small)  # one-time prep
    log_probs_s = cbow_forward(inputs, embedding_table, wt_s, b2_s,
                               vocab_size=vocab_size, tile_v=tile_small)
    log_probs_s = jax.block_until_ready(log_probs_s)

    for log_probs in (log_probs_a, log_probs_s):
        assert log_probs.shape == (1, vocab_size)
        assert bool(jnp.all(jnp.isfinite(log_probs)))
        # bf16 weight/mean stream -> loosened tolerance vs the f32 reference.
        assert jnp.allclose(log_probs, ref, atol=5e-2, rtol=5e-2)

    print("KERNEL_OK")
</pallas_src>

<mosaic_0001>
module attributes {stable_mosaic.version = 11 : i64} {
  func.func @cbow_single_tile_kernel(%arg0: i32, %arg1: memref<1x64xbf16, #tpu.memory_space<vmem>>, %arg2: memref<64x1024xbf16, #tpu.memory_space<vmem>>, %arg3: memref<1x1024xf32, #tpu.memory_space<vmem>>, %arg4: memref<1x1024xf32, #tpu.memory_space<vmem>>) attributes {dimension_semantics = [#tpu.dimension_semantics<arbitrary>], iteration_bounds = array<i64: 1>, scalar_prefetch = 0 : i64, scratch_operands = 0 : i64, tpu.core_type = #tpu.core_type<tc>, window_params = [{pipeline_mode = #tpu.pipeline_mode<synchronous>, transform_indices = @transform_0, window_bounds = array<i64: 1, 64>}, {transform_indices = @transform_1, window_bounds = array<i64: 64, 1024>}, {pipeline_mode = #tpu.pipeline_mode<synchronous>, transform_indices = @transform_2, window_bounds = array<i64: 1, 1024>}, {pipeline_mode = #tpu.pipeline_mode<synchronous>, transform_indices = @transform_3, window_bounds = array<i64: 1, 1024>}]} {
    %c0 = arith.constant 0 : index
    %c0_0 = arith.constant 0 : index
    %0 = vector.load %arg1[%c0, %c0_0] : memref<1x64xbf16, #tpu.memory_space<vmem>>, vector<1x64xbf16>
    %c0_1 = arith.constant 0 : index
    %c0_2 = arith.constant 0 : index
    %1 = vector.load %arg2[%c0_1, %c0_2] : memref<64x1024xbf16, #tpu.memory_space<vmem>>, vector<64x1024xbf16>
    %cst = arith.constant dense<0.000000e+00> : vector<1x1024xf32>
    %2 = tpu.matmul %0, %1, %cst {dimension_numbers = #tpu.dot_dimension_numbers<[1], [0], [0], [1], [0, 0, 1, 1], [], []>} : vector<1x64xbf16>, vector<64x1024xbf16>, vector<1x1024xf32> -> vector<1x1024xf32>
    %c0_3 = arith.constant 0 : index
    %c0_4 = arith.constant 0 : index
    %3 = vector.load %arg3[%c0_3, %c0_4] : memref<1x1024xf32, #tpu.memory_space<vmem>>, vector<1x1024xf32>
    %4 = arith.addf %2, %3 : vector<1x1024xf32>
    %cst_5 = arith.constant dense<0xFF800000> : vector<1xf32>
    %5 = vector.multi_reduction <maximumf>, %4, %cst_5 [1] : vector<1x1024xf32> to vector<1xf32>
    %6 = vector.shape_cast %5 : vector<1xf32> to vector<1x1xf32>
    %7 = vector.broadcast %6 : vector<1x1xf32> to vector<1x1024xf32>
    %8 = arith.subf %4, %7 : vector<1x1024xf32>
    %9 = math.exp %8 : vector<1x1024xf32>
    %cst_6 = arith.constant dense<0.000000e+00> : vector<1xf32>
    %10 = vector.multi_reduction <add>, %9, %cst_6 [1] : vector<1x1024xf32> to vector<1xf32>
    %11 = vector.shape_cast %10 : vector<1xf32> to vector<1x1xf32>
    %12 = math.log %11 : vector<1x1xf32>
    %13 = arith.addf %6, %12 : vector<1x1xf32>
    %14 = vector.broadcast %13 : vector<1x1xf32> to vector<1x1024xf32>
    %15 = arith.subf %4, %14 : vector<1x1024xf32>
    %c0_7 = arith.constant 0 : index
    %c0_8 = arith.constant 0 : index
    %16 = vector.load %arg4[%c0_7, %c0_8] : memref<1x1024xf32, #tpu.memory_space<vmem>>, vector<1x1024xf32>
    tpu.vector_store %arg4[%c0_7, %c0_8], %15 {strides = array<i32>} : memref<1x1024xf32, #tpu.memory_space<vmem>>, vector<1x1024xf32>,
    return
  }
  func.func @transform_0(%arg0: i32) -> (i32, i32) {
    %c0_i32 = arith.constant 0 : i32
    %c0_i32_0 = arith.constant 0 : i32
    %c0_i32_1 = arith.constant 0 : i32
    return %c0_i32, %c0_i32_0 : i32, i32
  }
  func.func @transform_1(%arg0: i32) -> (i32, i32) {
    %c0_i32 = arith.constant 0 : i32
    %c0_i32_0 = arith.constant 0 : i32
    return %c0_i32, %arg0 : i32, i32
  }
  func.func @transform_2(%arg0: i32) -> (i32, i32) {
    %c0_i32 = arith.constant 0 : i32
    %c0_i32_0 = arith.constant 0 : i32
    %c0_i32_1 = arith.constant 0 : i32
    return %c0_i32, %c0_i32_0 : i32, i32
  }
  func.func @transform_3(%arg0: i32) -> (i32, i32) {
    %c0_i32 = arith.constant 0 : i32
    %c0_i32_0 = arith.constant 0 : i32
    %c0_i32_1 = arith.constant 0 : i32
    return %c0_i32, %c0_i32_0 : i32, i32
  }
}

</mosaic_0001>

<llo_original>
// kernel: cbow_forward.1
$region0: #{cbow_forward.1}
  #allocation0 [shape = 'u32[]', space=smem, size = 0x4, offset = 0x4, fixed_abs, tag = 'smem constant byte address 0x4 - core index']
  #allocation1 [shape = 'u32[144,128]{1,0:T(1,128)}', space=vmem, size = 0x12000, scoped, tag = 'internal scratch']
  %s0 = inlined_call_operand.vmem [shape: bf16[1,64], index: 0, kind: input, shape index: {}]
  %s1 = inlined_call_operand.vmem [shape: bf16[64,1024], index: 1, kind: input, shape index: {}]
  %s2 = inlined_call_operand.vmem [shape: f32[1,1024], index: 2, kind: input, shape index: {}]
  %s3 = inlined_call_operand.hbm [shape: f32[1,1024], index: 3, kind: output, shape index: {}]
  %s4 = sld [smem:[#allocation0]]
  $region22: #{cbow_forward.1} parent=0
    _
  %s6 = ssub.s32 1, %s4
  %s7 = scalar_select 0, %s6, %s4
  $region1: #{cbow_forward.1} parent=0
    #allocation2 [shape = 'u8[4096]{0}', space=vmem, size = 0x1000, scoped, tag = 'output window, operand 0, single buffered']
    #allocation3 [shape = 's32[1]{0}', space=sflag, size = 0x4, scoped, tag = 'scoped memory for cbow_forward.1']
    %8 = vsyncpa [#allocation3], 0
    // Predicated region
    $region2: #{cbow_forward.1} parent=1 // pred_check
      _
    $region3: #{cbow_forward.1} parent=1 // pred_check_branch
      %10 = sbr.rel (0) target = $region5
    $region4: #{cbow_forward.1} parent=1 // pred_region
      _
    $region5: #{cbow_forward.1} parent=1 // pred_fallthru
      _
    // Predicated region
    $region6: #{cbow_forward.1} parent=1 // pred_check
      _
    $region7: #{cbow_forward.1} parent=1 // pred_check_branch
      %12 = sbr.rel (0) target = $region9
    $region8: #{cbow_forward.1} parent=1 // pred_region
      _
    $region9: #{cbow_forward.1} parent=1 // pred_fallthru
      _
    // Predicated region
    $region10: #{cbow_forward.1} parent=1 // pred_check
      _
    $region11: #{cbow_forward.1} parent=1 // pred_check_branch
      %14 = sbr.rel (0) target = $region13
    $region12: #{cbow_forward.1} parent=1 // pred_region
      _
    $region13: #{cbow_forward.1} parent=1 // pred_fallthru
      _
    %v16 = vld [vmem:[%s0] sm:$0x1]
    %v17 = vld [vmem:[%s1] sm:$0xff]
    %v18 = vld [vmem:[%s1 + $0x8] sm:$0xff]
    %v19 = vld [vmem:[%s1 + $0x10] sm:$0xff]
    %v20 = vld [vmem:[%s1 + $0x18] sm:$0xff]
    %v21 = vld [vmem:[%s1 + $0x20] sm:$0xff]
    %v22 = vld [vmem:[%s1 + $0x28] sm:$0xff]
    %v23 = vld [vmem:[%s1 + $0x30] sm:$0xff]
    %v24 = vld [vmem:[%s1 + $0x38] sm:$0xff]
    %v25 = vld [vmem:[%s1 + $0x40] sm:$0xff]
    %v26 = vld [vmem:[%s1 + $0x48] sm:$0xff]
    %v27 = vld [vmem:[%s1 + $0x50] sm:$0xff]
    %v28 = vld [vmem:[%s1 + $0x58] sm:$0xff]
    %v29 = vld [vmem:[%s1 + $0x60] sm:$0xff]
    %v30 = vld [vmem:[%s1 + $0x68] sm:$0xff]
    %v31 = vld [vmem:[%s1 + $0x70] sm:$0xff]
    %v32 = vld [vmem:[%s1 + $0x78] sm:$0xff]
    %v33 = vld [vmem:[%s1 + $0x80] sm:$0xff]
    %v34 = vld [vmem:[%s1 + $0x88] sm:$0xff]
    %v35 = vld [vmem:[%s1 + $0x90] sm:$0xff]
    %v36 = vld [vmem:[%s1 + $0x98] sm:$0xff]
    %v37 = vld [vmem:[%s1 + $0xa0] sm:$0xff]
    %v38 = vld [vmem:[%s1 + $0xa8] sm:$0xff]
    %v39 = vld [vmem:[%s1 + $0xb0] sm:$0xff]
    %v40 = vld [vmem:[%s1 + $0xb8] sm:$0xff]
    %v41 = vld [vmem:[%s1 + $0xc0] sm:$0xff]
    %v42 = vld [vmem:[%s1 + $0xc8] sm:$0xff]
    %v43 = vld [vmem:[%s1 + $0xd0] sm:$0xff]
    %v44 = vld [vmem:[%s1 + $0xd8] sm:$0xff]
    %v45 = vld [vmem:[%s1 + $0xe0] sm:$0xff]
    %v46 = vld [vmem:[%s1 + $0xe8] sm:$0xff]
    %v47 = vld [vmem:[%s1 + $0xf0] sm:$0xff]
    %v48 = vld [vmem:[%s1 + $0xf8] sm:$0xff]
    %v49 = vld [vmem:[%s2] sm:$0xff]
    %v82 = vunpack.c.l.b16 %v17
    %v83 = vunpack.c.h.b16 %v17
    %v84 = vunpack.c.l.b16 %v18
    %v85 = vunpack.c.h.b16 %v18
    %v86 = vunpack.c.l.b16 %v19
    %v87 = vunpack.c.h.b16 %v19
    %v88 = vunpack.c.l.b16 %v20
    %v89 = vunpack.c.h.b16 %v20
    %v90 = vunpack.c.l.b16 %v21
    %v91 = vunpack.c.h.b16 %v21
    %v92 = vunpack.c.l.b16 %v22
    %v93 = vunpack.c.h.b16 %v22
    %v94 = vunpack.c.l.b16 %v23
    %v95 = vunpack.c.h.b16 %v23
    %v96 = vunpack.c.l.b16 %v24
    %v97 = vunpack.c.h.b16 %v24
    %v98 = vunpack.c.l.b16 %v25
    %v99 = vunpack.c.h.b16 %v25
    %v100 = vunpack.c.l.b16 %v26
    %v101 = vunpack.c.h.b16 %v26
    %v102 = vunpack.c.l.b16 %v27
    %v103 = vunpack.c.h.b16 %v27
    %v104 = vunpack.c.l.b16 %v28
    %v105 = vunpack.c.h.b16 %v28
    %v106 = vunpack.c.l.b16 %v29
    %v107 = vunpack.c.h.b16 %v29
    %v108 = vunpack.c.l.b16 %v30
    %v109 = vunpack.c.h.b16 %v30
    %v110 = vunpack.c.l.b16 %v31
    %v111 = vunpack.c.h.b16 %v31
    %v112 = vunpack.c.l.b16 %v32
    %v113 = vunpack.c.h.b16 %v32
    %v114 = vunpack.c.l.b16 %v33
    %v115 = vunpack.c.h.b16 %v33
    %v116 = vunpack.c.l.b16 %v34
    %v117 = vunpack.c.h.b16 %v34
    %v118 = vunpack.c.l.b16 %v35
    %v119 = vunpack.c.h.b16 %v35
    %v120 = vunpack.c.l.b16 %v36
    %v121 = vunpack.c.h.b16 %v36
    %v122 = vunpack.c.l.b16 %v37
    %v123 = vunpack.c.h.b16 %v37
    %v124 = vunpack.c.l.b16 %v38
    %v125 = vunpack.c.h.b16 %v38
    %v126 = vunpack.c.l.b16 %v39
    %v127 = vunpack.c.h.b16 %v39
    %v128 = vunpack.c.l.b16 %v40
    %v129 = vunpack.c.h.b16 %v40
    %v130 = vunpack.c.l.b16 %v41
    %v131 = vunpack.c.h.b16 %v41
    %v132 = vunpack.c.l.b16 %v42
    %v133 = vunpack.c.h.b16 %v42
    %v134 = vunpack.c.l.b16 %v43
    %v135 = vunpack.c.h.b16 %v43
    %v136 = vunpack.c.l.b16 %v44
    %v137 = vunpack.c.h.b16 %v44
    %v138 = vunpack.c.l.b16 %v45
    %v139 = vunpack.c.h.b16 %v45
    %v140 = vunpack.c.l.b16 %v46
    %v141 = vunpack.c.h.b16 %v46
    %v142 = vunpack.c.l.b16 %v47
    %v143 = vunpack.c.h.b16 %v47
    %v144 = vunpack.c.l.b16 %v48
    %v145 = vunpack.c.h.b16 %v48
    %v146 = vpack.c.b16 %v90, %v82
    %v147 = vpack.c.b16 %v91, %v83
    %v148 = vpack.c.b16 %v92, %v84
    %v149 = vpack.c.b16 %v93, %v85
    %v150 = vpack.c.b16 %v94, %v86
    %v151 = vpack.c.b16 %v95, %v87
    %v152 = vpack.c.b16 %v96, %v88
    %v153 = vpack.c.b16 %v97, %v89
    %v154 = vpack.c.b16 %v106, %v98
    %v155 = vpack.c.b16 %v107, %v99
    %v156 = vpack.c.b16 %v108, %v100
    %v157 = vpack.c.b16 %v109, %v101
    %v158 = vpack.c.b16 %v110, %v102
    %v159 = vpack.c.b16 %v111, %v103
    %v160 = vpack.c.b16 %v112, %v104
    %v161 = vpack.c.b16 %v113, %v105
    %v162 = vpack.c.b16 %v122, %v114
    %v163 = vpack.c.b16 %v123, %v115
    %v164 = vpack.c.b16 %v124, %v116
    %v165 = vpack.c.b16 %v125, %v117
    %v166 = vpack.c.b16 %v126, %v118
    %v167 = vpack.c.b16 %v127, %v119
    %v168 = vpack.c.b16 %v128, %v120
    %v169 = vpack.c.b16 %v129, %v121
    %v170 = vpack.c.b16 %v138, %v130
    %v171 = vpack.c.b16 %v139, %v131
    %v172 = vpack.c.b16 %v140, %v132
    %v173 = vpack.c.b16 %v141, %v133
    %v174 = vpack.c.b16 %v142, %v134
    %v175 = vpack.c.b16 %v143, %v135
    %v176 = vpack.c.b16 %v144, %v136
    %v177 = vpack.c.b16 %v145, %v137
    %v211 = vlaneseq
    %v212 = vshrl.u32 %v211, 7
    %v213 = vsub.s32 0, %v212
    %v214 = vrot.slane %v49, %v213
    %v215 = vlaneseq
    %v216 = vshrl.u32 %v215, 7
    %v217 = vsub.s32 1, %v216
    %v218 = vrot.slane %v49, %v217
    %v219 = vlaneseq
    %v220 = vshrl.u32 %v219, 7
    %v221 = vsub.s32 2, %v220
    %v222 = vrot.slane %v49, %v221
    %v223 = vlaneseq
    %v224 = vshrl.u32 %v223, 7
    %v225 = vsub.s32 3, %v224
    %v226 = vrot.slane %v49, %v225
    %v227 = vlaneseq
    %v228 = vshrl.u32 %v227, 7
    %v229 = vsub.s32 4, %v228
    %v230 = vrot.slane %v49, %v229
    %v231 = vlaneseq
    %v232 = vshrl.u32 %v231, 7
    %v233 = vsub.s32 5, %v232
    %v234 = vrot.slane %v49, %v233
    %v235 = vlaneseq
    %v236 = vshrl.u32 %v235, 7
    %v237 = vsub.s32 6, %v236
    %v238 = vrot.slane %v49, %v237
    %v239 = vlaneseq
    %v240 = vshrl.u32 %v239, 7
    %v241 = vsub.s32 7, %v240
    %v242 = vrot.slane %v49, %v241
    %vm251 = vcmask 523264
    %v253 = vsel %vm251, %v16, 0
    %255 = vmatprep.subr.bf16.mxu0 %v147
    %256 = vmatpush1.bf16.msra.mxu0 %v146
    %257 = vmatprep.subr.bf16.mxu0 %v155
    %258 = vmatpush1.bf16.msra.mxu0 %v154
    %259 = vmatprep.subr.bf16.mxu0 %v163
    %260 = vmatpush1.bf16.msra.mxu0 %v162
    %261 = vmatprep.subr.bf16.mxu0 %v171
    %262 = vmatpush1.bf16.msra.mxu0 %v170
    %263 = vmatprep.subr.bf16.mxu0 0
    %264 = vmatpush1.bf16.msra.mxu0 0
    %265 = vmatprep.subr.bf16.mxu0 0
    %266 = vmatpush1.bf16.msra.mxu0 0
    %267 = vmatprep.subr.bf16.mxu0 0
    %268 = vmatpush1.bf16.msra.mxu0 0
    %269 = vmatprep.subr.bf16.mxu0 0
    %270 = vmatpush1.bf16.msra.mxu0 0
    %271 = vmatprep.subr.bf16.mxu0 0
    %272 = vmatpush1.bf16.msra.mxu0 0
    %273 = vmatprep.subr.bf16.mxu0 0
    %274 = vmatpush1.bf16.msra.mxu0 0
    %275 = vmatprep.subr.bf16.mxu0 0
    %276 = vmatpush1.bf16.msra.mxu0 0
    %277 = vmatprep.subr.bf16.mxu0 0
    %278 = vmatpush1.bf16.msra.mxu0 0
    %279 = vmatprep.subr.bf16.mxu0 0
    %280 = vmatpush1.bf16.msra.mxu0 0
    %281 = vmatprep.subr.bf16.mxu0 0
    %282 = vmatpush1.bf16.msra.mxu0 0
    %283 = vmatprep.subr.bf16.mxu0 0
    %284 = vmatpush1.bf16.msra.mxu0 0
    %285 = vmatprep.subr.bf16.mxu0 0
    %286 = vmatpush1.bf16.msra.mxu0 0
    %287 = vmatprep.mubr.bf16.mxu0 0
    %288 = vmatmul.mubr.bf16.gmra.mrb[0].mxu0 %v253
    %v289 = vpop.f32.mrb[0].mxu0
    %v290 = vadd.f32 %v214, %v289
    %v291 = vpop.f32.mrb[0].mxu0
    %v292 = vadd.f32 %v218, %v291
    %v293 = vpop.f32.mrb[0].mxu0
    %v294 = vpop.f32.mrb[0].mxu0
    %295 = vdwg.mxu0
    %296 = vmatprep.subr.bf16.mxu0 %v149
    %297 = vmatpush1.bf16.msra.mxu0 %v148
    %298 = vmatprep.subr.bf16.mxu0 %v157
    %299 = vmatpush1.bf16.msra.mxu0 %v156
    %300 = vmatprep.subr.bf16.mxu0 %v165
    %301 = vmatpush1.bf16.msra.mxu0 %v164
    %302 = vmatprep.subr.bf16.mxu0 %v173
    %303 = vmatpush1.bf16.msra.mxu0 %v172
    %304 = vmatprep.subr.bf16.mxu0 0
    %305 = vmatpush1.bf16.msra.mxu0 0
    %306 = vmatprep.subr.bf16.mxu0 0
    %307 = vmatpush1.bf16.msra.mxu0 0
    %308 = vmatprep.subr.bf16.mxu0 0
    %309 = vmatpush1.bf16.msra.mxu0 0
    %310 = vmatprep.subr.bf16.mxu0 0
    %311 = vmatpush1.bf16.msra.mxu0 0
    %312 = vmatprep.subr.bf16.mxu0 0
    %313 = vmatpush1.bf16.msra.mxu0 0
    %314 = vmatprep.subr.bf16.mxu0 0
    %315 = vmatpush1.bf16.msra.mxu0 0
    %316 = vmatprep.subr.bf16.mxu0 0
    %317 = vmatpush1.bf16.msra.mxu0 0
    %318 = vmatprep.subr.bf16.mxu0 0
    %319 = vmatpush1.bf16.msra.mxu0 0
    %320 = vmatprep.subr.bf16.mxu0 0
    %321 = vmatpush1.bf16.msra.mxu0 0
    %322 = vmatprep.subr.bf16.mxu0 0
    %323 = vmatpush1.bf16.msra.mxu0 0
    %324 = vmatprep.subr.bf16.mxu0 0
    %325 = vmatpush1.bf16.msra.mxu0 0
    %326 = vmatprep.subr.bf16.mxu0 0
    %327 = vmatpush1.bf16.msra.mxu0 0
    %328 = vmatprep.mubr.bf16.mxu0 0
    %329 = vmatmul.mubr.bf16.gmra.mrb[0].mxu0 %v253
    %v330 = vpop.f32.mrb[0].mxu0
    %v331 = vadd.f32 %v222, %v330
    %v332 = vpop.f32.mrb[0].mxu0
    %v333 = vadd.f32 %v226, %v332
    %v334 = vpop.f32.mrb[0].mxu0
    %v335 = vpop.f32.mrb[0].mxu0
    %336 = vdwg.mxu0
    %337 = vmatprep.subr.bf16.mxu0 %v151
    %338 = vmatpush1.bf16.msra.mxu0 %v150
    %339 = vmatprep.subr.bf16.mxu0 %v159
    %340 = vmatpush1.bf16.msra.mxu0 %v158
    %341 = vmatprep.subr.bf16.mxu0 %v167
    %342 = vmatpush1.bf16.msra.mxu0 %v166
    %343 = vmatprep.subr.bf16.mxu0 %v175
    %344 = vmatpush1.bf16.msra.mxu0 %v174
    %345 = vmatprep.subr.bf16.mxu0 0
    %346 = vmatpush1.bf16.msra.mxu0 0
    %347 = vmatprep.subr.bf16.mxu0 0
    %348 = vmatpush1.bf16.msra.mxu0 0
    %349 = vmatprep.subr.bf16.mxu0 0
    %350 = vmatpush1.bf16.msra.mxu0 0
    %351 = vmatprep.subr.bf16.mxu0 0
    %352 = vmatpush1.bf16.msra.mxu0 0
    %353 = vmatprep.subr.bf16.mxu0 0
    %354 = vmatpush1.bf16.msra.mxu0 0
    %355 = vmatprep.subr.bf16.mxu0 0
    %356 = vmatpush1.bf16.msra.mxu0 0
    %357 = vmatprep.subr.bf16.mxu0 0
    %358 = vmatpush1.bf16.msra.mxu0 0
    %359 = vmatprep.subr.bf16.mxu0 0
    %360 = vmatpush1.bf16.msra.mxu0 0
    %361 = vmatprep.subr.bf16.mxu0 0
    %362 = vmatpush1.bf16.msra.mxu0 0
    %363 = vmatprep.subr.bf16.mxu0 0
    %364 = vmatpush1.bf16.msra.mxu0 0
    %365 = vmatprep.subr.bf16.mxu0 0
    %366 = vmatpush1.bf16.msra.mxu0 0
    %367 = vmatprep.subr.bf16.mxu0 0
    %368 = vmatpush1.bf16.msra.mxu0 0
    %369 = vmatprep.mubr.bf16.mxu0 0
    %370 = vmatmul.mubr.bf16.gmra.mrb[0].mxu0 %v253
    %v371 = vpop.f32.mrb[0].mxu0
    %v372 = vadd.f32 %v230, %v371
    %v373 = vpop.f32.mrb[0].mxu0
    %v374 = vadd.f32 %v234, %v373
    %v375 = vpop.f32.mrb[0].mxu0
    %v376 = vpop.f32.mrb[0].mxu0
    %377 = vdwg.mxu0
    %378 = vmatprep.subr.bf16.mxu0 %v153
    %379 = vmatpush1.bf16.msra.mxu0 %v152
    %380 = vmatprep.subr.bf16.mxu0 %v161
    %381 = vmatpush1.bf16.msra.mxu0 %v160
    %382 = vmatprep.subr.bf16.mxu0 %v169
    %383 = vmatpush1.bf16.msra.mxu0 %v168
    %384 = vmatprep.subr.bf16.mxu0 %v177
    %385 = vmatpush1.bf16.msra.mxu0 %v176
    %386 = vmatprep.subr.bf16.mxu0 0
    %387 = vmatpush1.bf16.msra.mxu0 0
    %388 = vmatprep.subr.bf16.mxu0 0
    %389 = vmatpush1.bf16.msra.mxu0 0
    %390 = vmatprep.subr.bf16.mxu0 0
    %391 = vmatpush1.bf16.msra.mxu0 0
    %392 = vmatprep.subr.bf16.mxu0 0
    %393 = vmatpush1.bf16.msra.mxu0 0
    %394 = vmatprep.subr.bf16.mxu0 0
    %395 = vmatpush1.bf16.msra.mxu0 0
    %396 = vmatprep.subr.bf16.mxu0 0
    %397 = vmatpush1.bf16.msra.mxu0 0
    %398 = vmatprep.subr.bf16.mxu0 0
    %399 = vmatpush1.bf16.msra.mxu0 0
    %400 = vmatprep.subr.bf16.mxu0 0
    %401 = vmatpush1.bf16.msra.mxu0 0
    %402 = vmatprep.subr.bf16.mxu0 0
    %403 = vmatpush1.bf16.msra.mxu0 0
    %404 = vmatprep.subr.bf16.mxu0 0
    %405 = vmatpush1.bf16.msra.mxu0 0
    %406 = vmatprep.subr.bf16.mxu0 0
    %407 = vmatpush1.bf16.msra.mxu0 0
    %408 = vmatprep.subr.bf16.mxu0 0
    %409 = vmatpush1.bf16.msra.mxu0 0
    %410 = vmatprep.mubr.bf16.mxu0 0
    %411 = vmatmul.mubr.bf16.gmra.mrb[0].mxu0 %v253
    %v412 = vpop.f32.mrb[0].mxu0
    %v413 = vadd.f32 %v238, %v412
    %v414 = vpop.f32.mrb[0].mxu0
    %v415 = vadd.f32 %v242, %v414
    %v416 = vpop.f32.mrb[0].mxu0
    %v417 = vpop.f32.mrb[0].mxu0
    %418 = vdwg.mxu0
    %vm419 = vcmask 1040384
    %v420 = vsel %vm419, %v290, -inf
    %v421 = vsel %vm419, %v292, -inf
    %v422 = vsel %vm419, %v331, -inf
    %v423 = vsel %vm419, %v333, -inf
    %v424 = vsel %vm419, %v372, -inf
    %v425 = vmax.f32 %v420, %v424
    %v426 = vsel %vm419, %v374, -inf
    %v427 = vmax.f32 %v421, %v426
    %v428 = vsel %vm419, %v413, -inf
    %v429 = vmax.f32 %v422, %v428
    %v430 = vsel %vm419, %v415, -inf
    %v431 = vmax.f32 %v423, %v430
    %v432 = vmax.f32 %v425, %v427
    %v433 = vmax.f32 %v429, %v431
    %v434 = vmax.f32 %v432, %v433
    %435 = vmax.xlane.f32.xlu0 %v434
    %v436 = vpop.xlane.xlu0 %435
    %v437 = vsub.f32 %v290, %v436
    %v438 = vsub.f32 %v292, %v436
    %v439 = vsub.f32 %v331, %v436
    %v440 = vsub.f32 %v333, %v436
    %v441 = vsub.f32 %v372, %v436
    %v442 = vsub.f32 %v374, %v436
    %v443 = vsub.f32 %v413, %v436
    %v444 = vsub.f32 %v415, %v436
    %v445 = vmul.f32 %v437, 1.442695
    %v446 = vpow.pop %v445
    %v447 = vmul.f32 %v438, 1.442695
    %v448 = vpow.pop %v447
    %v449 = vmul.f32 %v439, 1.442695
    %v450 = vpow.pop %v449
    %v451 = vmul.f32 %v440, 1.442695
    %v452 = vpow.pop %v451
    %v453 = vmul.f32 %v441, 1.442695
    %v454 = vpow.pop %v453
    %v455 = vmul.f32 %v442, 1.442695
    %v456 = vpow.pop %v455
    %v457 = vmul.f32 %v443, 1.442695
    %v458 = vpow.pop %v457
    %v459 = vmul.f32 %v444, 1.442695
    %v460 = vpow.pop %v459
    %v461 = vsel %vm419, %v446, 0.0
    %v462 = vsel %vm419, %v448, 0.0
    %v463 = vadd.f32 %v461, %v462
    %v464 = vsel %vm419, %v450, 0.0
    %v465 = vadd.f32 %v463, %v464
    %v466 = vsel %vm419, %v452, 0.0
    %v467 = vadd.f32 %v465, %v466
    %v468 = vsel %vm419, %v454, 0.0
    %v469 = vadd.f32 %v467, %v468
    %v470 = vsel %vm419, %v456, 0.0
    %v471 = vadd.f32 %v469, %v470
    %v472 = vsel %vm419, %v458, 0.0
    %v473 = vadd.f32 %v471, %v472
    %v474 = vsel %vm419, %v460, 0.0
    %v475 = vadd.f32 %v473, %v474
    %476 = vadd.xlane.f32.xlu0 %v475
    %v477 = vpop.xlane.xlu0 %476
    %v478 = vlog2.pop %v477
    %v479 = vmul.f32 %v478, 0.6931472
    %v480 = vadd.f32 %v436, %v479
    %v481 = vsub.f32 %v290, %v480
    %v482 = vsub.f32 %v292, %v480
    %v483 = vsub.f32 %v331, %v480
    %v484 = vsub.f32 %v333, %v480
    %v485 = vsub.f32 %v372, %v480
    %v486 = vsub.f32 %v374, %v480
    %v487 = vsub.f32 %v413, %v480
    %v488 = vsub.f32 %v415, %v480
    %v497 = vcombine.low %v481, %v482
    %v498 = vcombine.low %v483, %v484
    %v499 = vcombine.low %v485, %v486
    %v500 = vcombine.low %v487, %v488
    %v502 = vunpack.c.l.s4 1966171168
    %v503 = vunpack.c.0.s8 %v502
    %v504 = vlaneseq
    %v505 = vshrl.u32 %v504, 7
    %v506 = vsub.s32 %v503, %v505
    %v507 = vrot.slane %v497, %v506
    %v509 = vunpack.c.l.s4 1966171168
    %v510 = vunpack.c.0.s8 %v509
    %v511 = vlaneseq
    %v512 = vshrl.u32 %v511, 7
    %v513 = vsub.s32 %v510, %v512
    %v514 = vrot.slane %v498, %v513
    %v516 = vunpack.c.l.s4 1966171168
    %v517 = vunpack.c.0.s8 %v516
    %v518 = vlaneseq
    %v519 = vshrl.u32 %v518, 7
    %v520 = vsub.s32 %v517, %v519
    %v521 = vrot.slane %v499, %v520
    %v523 = vunpack.c.l.s4 1966171168
    %v524 = vunpack.c.0.s8 %v523
    %v525 = vlaneseq
    %v526 = vshrl.u32 %v525, 7
    %v527 = vsub.s32 %v524, %v526
    %v528 = vrot.slane %v500, %v527
    %v529 = vcombine.low %v507, %v514
    %v530 = vcombine.low %v521, %v528
    %v532 = vunpack.c.l.s4 1966171168
    %v533 = vunpack.c.0.s8 %v532
    %v534 = vlaneseq
    %v535 = vshrl.u32 %v534, 7
    %v536 = vsub.s32 %v533, %v535
    %v537 = vrot.slane %v529, %v536
    %v539 = vunpack.c.l.s4 1966171168
    %v540 = vunpack.c.0.s8 %v539
    %v541 = vlaneseq
    %v542 = vshrl.u32 %v541, 7
    %v543 = vsub.s32 %v540, %v542
    %v544 = vrot.slane %v530, %v543
    %v545 = vcombine.low %v537, %v544
    %547 = vst [vmem:[#allocation2] sm:$0xff] %v545
    // Predicated region
    $region14: #{cbow_forward.1} parent=1 // pred_check
      _
    $region15: #{cbow_forward.1} parent=1 // pred_check_branch
      %549 = sbr.rel (0) target = $region17
    $region16: #{cbow_forward.1} parent=1 // pred_region
      %s551 = ssub.s32 128, 128
      %552 = vsyncadd [#allocation3], %s551
      %s554 = sshll.u32 [#allocation2], 4
      %s555 = int_to_ptr.vmem [resolvable:$true] %s554
      %557 = dma.vmem_to_hbm [thread:$0]  %s555, 128, %s3, [#allocation3]
    $region17: #{cbow_forward.1} parent=1 // pred_fallthru
      _
    // Predicated region
    $region18: #{cbow_forward.1} parent=1 // pred_check
      _
    $region19: #{cbow_forward.1} parent=1 // pred_check_branch
      %559 = sbr.rel (0) target = $region21
    $region20: #{cbow_forward.1} parent=1 // pred_region
      %560 = dma.done [#allocation3], 128
    $region21: #{cbow_forward.1} parent=1 // pred_fallthru
      _
    %561 = vsyncpa [#allocation3], 1

</llo_original>
